<compile_context>
chip_gen: v5e
topology: v5e:2x2
jax: 0.10.0
libtpu: 0.0.40
codegen_flags: <defaults>
</compile_context>

<pallas_src>
import functools

import jax
import jax.numpy as jnp
from jax.experimental import pallas as pl
from jax.experimental.pallas import tpu as pltpu


def _round_up(a, m):
    return (a + m - 1) // m * m


def _cdiv(a, m):
    return (a + m - 1) // m


def _choose_k_tiling(f):
    """Returns (tk, kp): K tile size and zero-padded contraction length."""
    if f <= 2048:
        return f, f            # single resident K slab; block == full dim
    tk = 512
    return tk, _round_up(f, tk)


def _vae_encoder_kernel(x_ref, w1_ref, b1_ref, wh_ref, bh_ref, eps_ref,
                        z_ref, kl_ref, h_acc,
                        *, true_b, tb, lp, mask_rows):
    # x_ref:  [TB, TK] bf16     w1_ref: [TK, 128] bf16    b1_ref: [1, 128]  f32
    # wh_ref: [128, 2*Lp] bf16  bh_ref: [1, 2*Lp] f32     eps_ref: [TB, Lp] f32
    # z_ref:  [TB, Lp] f32      kl_ref: [8, Lp] f32       h_acc:  [TB, 128] f32
    i = pl.program_id(0)
    k = pl.program_id(1)

    @pl.when(k == 0)
    def _():
        h_acc[...] = jnp.zeros_like(h_acc)

    # K-tiled Linear(F, 128): f32 accumulation of bf16 MXU products.
    h_acc[...] += jnp.dot(x_ref[...], w1_ref[...],
                          preferred_element_type=jnp.float32)

    @pl.when(k == pl.num_programs(1) - 1)
    def _():
        h = jnp.maximum(h_acc[...] + b1_ref[...], 0.0)          # bias + ReLU, f32
        wh = wh_ref[...]
        # fused heads: one MXU matmul produces [mean | log_var] (lane-padded)
        heads = jnp.dot(h.astype(wh.dtype), wh,
                        preferred_element_type=jnp.float32) + bh_ref[...]
        mean = heads[:, :lp]
        log_var = heads[:, lp:]
        sigma = jnp.exp(log_var)

        # reparameterization trick (padded latent lanes: mean=0, sigma=1, eps=0)
        z_ref[...] = mean + sigma * eps_ref[...]

        # KL term: -0.5 * sum(1 + log_var - mean^2 - sigma).  Padded latent
        # lanes contribute exactly 0; padded/garbage batch rows are masked via
        # jnp.where (NaN-safe, unlike multiplying by 0).
        per_elem = 1.0 + log_var - mean * mean - sigma
        if mask_rows:
            rows = i * tb + jax.lax.broadcasted_iota(jnp.int32, (tb, 1), 0)
            per_elem = jnp.where(rows < true_b, per_elem, 0.0)
        kl_ref[...] = per_elem.reshape(tb // 8, 8, lp).sum(axis=0)


def prepare_params(params, latent_dim, compute_dtype=jnp.bfloat16):
    """One-time layout prep: transpose + K-pad w1, fuse + lane-pad the heads."""
    w1, b1, wm, bm, wv, bv = params
    hidden, f = w1.shape
    lp = _round_up(latent_dim, 128)
    tk, kp = _choose_k_tiling(f)

    # encoder weight: [F, 128] transposed, zero-padded along K to kp, bf16
    w1t = (jnp.zeros((kp, hidden), jnp.float32)
           .at[:f, :].set(jnp.asarray(w1, jnp.float32).T)
           .astype(compute_dtype))
    b1r = jnp.asarray(b1, jnp.float32).reshape(1, hidden)

    # fused mean/log_var head: [128, 2*Lp]; zero-padded latent lanes make their
    # KL contribution exactly 0 (1 + 0 - 0 - exp(0)).
    wm_p = jnp.zeros((hidden, lp), jnp.float32).at[:, :latent_dim].set(
        jnp.asarray(wm, jnp.float32).T)
    wv_p = jnp.zeros((hidden, lp), jnp.float32).at[:, :latent_dim].set(
        jnp.asarray(wv, jnp.float32).T)
    wh = jnp.concatenate([wm_p, wv_p], axis=1).astype(compute_dtype)

    bm_p = jnp.zeros((1, lp), jnp.float32).at[0, :latent_dim].set(bm)
    bv_p = jnp.zeros((1, lp), jnp.float32).at[0, :latent_dim].set(bv)
    bh = jnp.concatenate([bm_p, bv_p], axis=1)                  # f32

    return (w1t, b1r, wh, bh, f, tk)


def variational_encoder_forward(x, prepped, eps):
    """x: [B, C, H, W]; eps: [B, latent_dim] standard normal. Returns (z, kl)."""
    w1t, b1r, wh, bh, f, tk = prepped
    kp, hidden = w1t.shape
    lp = wh.shape[1] // 2
    compute_dtype = w1t.dtype

    b = x.shape[0]
    latent_dim = eps.shape[1]

    x_flat = x.reshape(b, -1)
    assert x_flat.shape[1] == f, "flattened input does not match Linear(H*W,128)"
    x_flat = x_flat.astype(compute_dtype)
    if kp != f:
        # zero-pad the contraction dim once so no K block is ever partial
        x_flat = jnp.pad(x_flat, ((0, 0), (0, kp - f)))
    n_k = kp // tk

    eps_p = eps.astype(jnp.float32)
    if lp != latent_dim:
        eps_p = jnp.pad(eps_p, ((0, 0), (0, lp - latent_dim)))

    # Minimum of 8 rows (sublane quantum); otherwise NO batch padding — the grid
    # uses cdiv(b, tb) and the ragged last block is masked inside the kernel.
    bp = max(b, 8)
    if bp != b:
        x_flat = jnp.pad(x_flat, ((0, bp - b), (0, 0)))
        eps_p = jnp.pad(eps_p, ((0, bp - b), (0, 0)))

    # Batch tile: as large as the VMEM budget allows (v5e/v6e roofline), but
    # target >= 2 tiles so v7x megacore can split the batch across both TCs.
    tb_cap = 512
    while tb_cap > 8 and 2 * tb_cap * tk * x_flat.dtype.itemsize > (8 << 20):
        tb_cap //= 2
    n_target = max(2, _cdiv(bp, tb_cap))
    tb = min(_round_up(_cdiv(bp, n_target), 8), tb_cap)
    n_tiles = _cdiv(bp, tb)
    mask_rows = (b % tb) != 0

    # scoped-VMEM budget from the actual (double-buffered) block footprint
    wsz = jnp.dtype(compute_dtype).itemsize
    footprint = (2 * tb * tk * wsz             # x blocks
                 + 2 * tk * hidden * wsz       # w1 blocks
                 + 2 * hidden * 2 * lp * wsz   # fused head weight
                 + 2 * (hidden + 2 * lp) * 4   # biases
                 + 2 * tb * lp * 4             # eps blocks
                 + 2 * tb * lp * 4             # z blocks
                 + 2 * 8 * lp * 4              # kl partial blocks
                 + tb * hidden * 4)            # h accumulator scratch
    vmem_limit = int(min(max(2 * footprint, 32 << 20), 96 << 20))

    kernel = functools.partial(_vae_encoder_kernel, true_b=b, tb=tb, lp=lp,
                               mask_rows=mask_rows)

    z_p, kl_parts = pl.pallas_call(
        kernel,
        out_shape=(
            jax.ShapeDtypeStruct((bp, lp), jnp.float32),
            jax.ShapeDtypeStruct((n_tiles * 8, lp), jnp.float32),
        ),
        grid_spec=pltpu.PrefetchScalarGridSpec(
            num_scalar_prefetch=0,
            grid=(n_tiles, n_k),
            in_specs=[
                pl.BlockSpec((tb, tk), lambda i, k: (i, k)),           # x tile
                pl.BlockSpec((tk, hidden), lambda i, k: (k, 0)),       # w1 K-slab
                pl.BlockSpec((1, hidden), lambda i, k: (0, 0)),        # b1
                pl.BlockSpec((hidden, 2 * lp), lambda i, k: (0, 0)),   # fused W
                pl.BlockSpec((1, 2 * lp), lambda i, k: (0, 0)),        # fused b
                pl.BlockSpec((tb, lp), lambda i, k: (i, 0)),           # eps tile
            ],
            out_specs=(
                pl.BlockSpec((tb, lp), lambda i, k: (i, 0)),           # z tile
                pl.BlockSpec((8, lp), lambda i, k: (i, 0)),            # kl partials
            ),
            scratch_shapes=[pltpu.VMEM((tb, hidden), jnp.float32)],
        ),
        compiler_params=pltpu.CompilerParams(
            dimension_semantics=("parallel", "arbitrary"),
            vmem_limit_bytes=vmem_limit,
        ),
    )(x_flat, w1t, b1r, wh, bh, eps_p)

    z = z_p[:b, :latent_dim]
    kl = -0.5 * jnp.sum(kl_parts)
    return z, kl


def init_params(key, height, width, latent_dim, hidden=128):
    """Deterministic synthetic init (fan-in scaled; log_var head kept modest)."""
    f = height * width
    k1, k2, k3, k4, k5, k6 = jax.random.split(key, 6)
    s1 = 1.0 / float(f) ** 0.5
    sh = 1.0 / float(hidden) ** 0.5
    w1 = jax.random.normal(k1, (hidden, f), jnp.float32) * s1
    b1 = jax.random.normal(k2, (hidden,), jnp.float32) * s1
    wm = jax.random.normal(k3, (latent_dim, hidden), jnp.float32) * sh
    bm = jax.random.normal(k4, (latent_dim,), jnp.float32) * sh
    wv = jax.random.normal(k5, (latent_dim, hidden), jnp.float32) * (0.3 * sh)
    bv = jax.random.normal(k6, (latent_dim,), jnp.float32) * (0.1 * sh)
    return (w1, b1, wm, bm, wv, bv)


def reference_forward(x, params, eps, matmul_dtype=jnp.float32):
    """Pure-JAX reference mirroring the PyTorch forward.  matmul_dtype=bfloat16
    reproduces the kernel's precision (bf16 MXU inputs, f32 accum/elementwise)."""
    w1, b1, wm, bm, wv, bv = params
    xf = x.reshape(x.shape[0], -1).astype(matmul_dtype)
    h = jnp.dot(xf, w1.T.astype(matmul_dtype),
                preferred_element_type=jnp.float32) + b1
    h = jnp.maximum(h, 0.0)
    hm = h.astype(matmul_dtype)
    mean = jnp.dot(hm, wm.T.astype(matmul_dtype),
                   preferred_element_type=jnp.float32) + bm
    log_var = jnp.dot(hm, wv.T.astype(matmul_dtype),
                      preferred_element_type=jnp.float32) + bv
    sigma = jnp.exp(log_var)
    z = mean + sigma * eps
    kl = -0.5 * jnp.sum(1.0 + log_var - mean * mean - sigma)
    return z, kl


def _run_case(batch, height, width, latent, seed):
    key = jax.random.PRNGKey(seed)
    kx, kparam, ke = jax.random.split(key, 3)
    x = jax.random.normal(kx, (batch, 1, height, width), jnp.float32)
    params = init_params(kparam, height, width, latent)
    eps = jax.random.normal(ke, (batch, latent), jnp.float32)  # randn_like(log_var)

    prepped = prepare_params(params, latent)                   # one-time layout prep
    z, kl = variational_encoder_forward(x, prepped, eps)
    z = jax.block_until_ready(z)
    kl = jax.block_until_ready(kl)

    assert z.shape == (batch, latent)
    assert bool(jnp.all(jnp.isfinite(z))) and bool(jnp.isfinite(kl))

    # precision-matched reference (bf16 matmul inputs, f32 accumulation/elementwise)
    z_m, kl_m = reference_forward(x, params, eps, matmul_dtype=jnp.bfloat16)
    assert jnp.allclose(z, z_m, atol=2e-2, rtol=2e-2)
    assert jnp.allclose(kl, kl_m, atol=0.5, rtol=1e-2)

    # loose sanity check against the full-f32 PyTorch-equivalent math
    z_f, kl_f = reference_forward(x, params, eps, matmul_dtype=jnp.float32)
    assert jnp.allclose(z, z_f, atol=0.1, rtol=0.05)
    assert jnp.allclose(kl, kl_f, atol=2.0, rtol=0.05)


if __name__ == "__main__":
    # Small spec-scale case: single K slab (F=256), batch < one tile.
    _run_case(batch=2, height=16, width=16, latent=8, seed=0)
    # Exercises the K-tiled path (F=2304 -> tk=512, Kp=2560) and a ragged,
    # multi-tile batch (B=20 -> two 16-row tiles, last one partial + masked).
    _run_case(batch=20, height=48, width=48, latent=8, seed=1)
    print("KERNEL_OK")
</pallas_src>

<mosaic_0001>
module attributes {stable_mosaic.version = 11 : i64} {
  func.func @_vae_encoder_kernel(%arg0: i32, %arg1: i32, %arg2: memref<8x256xbf16, #tpu.memory_space<vmem>>, %arg3: memref<256x128xbf16, #tpu.memory_space<vmem>>, %arg4: memref<1x128xf32, #tpu.memory_space<vmem>>, %arg5: memref<128x256xbf16, #tpu.memory_space<vmem>>, %arg6: memref<1x256xf32, #tpu.memory_space<vmem>>, %arg7: memref<8x128xf32, #tpu.memory_space<vmem>>, %arg8: memref<8x128xf32, #tpu.memory_space<vmem>>, %arg9: memref<8x128xf32, #tpu.memory_space<vmem>>, %arg10: memref<8x128xf32, #tpu.memory_space<vmem>>) attributes {dimension_semantics = [#tpu.dimension_semantics<parallel>, #tpu.dimension_semantics<arbitrary>], iteration_bounds = array<i64: 1, 1>, scalar_prefetch = 0 : i64, scratch_operands = 1 : i64, tpu.core_type = #tpu.core_type<tc>, window_params = [{transform_indices = @transform_0, window_bounds = array<i64: 8, 256>}, {transform_indices = @transform_1, window_bounds = array<i64: 256, 128>}, {pipeline_mode = #tpu.pipeline_mode<synchronous>, transform_indices = @transform_2, window_bounds = array<i64: 1, 128>}, {pipeline_mode = #tpu.pipeline_mode<synchronous>, transform_indices = @transform_3, window_bounds = array<i64: 128, 256>}, {pipeline_mode = #tpu.pipeline_mode<synchronous>, transform_indices = @transform_4, window_bounds = array<i64: 1, 256>}, {transform_indices = @transform_5, window_bounds = array<i64: 8, 128>}, {transform_indices = @transform_6, window_bounds = array<i64: 8, 128>}, {transform_indices = @transform_7, window_bounds = array<i64: 8, 128>}]} {
    %c0_i32 = arith.constant 0 : i32
    %0 = arith.cmpi eq, %arg1, %c0_i32 : i32
    %1 = arith.extui %0 : i1 to i32
    %c0_i32_0 = arith.constant 0 : i32
    %2 = arith.cmpi ne, %1, %c0_i32_0 : i32
    scf.if %2 {
      %cst_10 = arith.constant 0.000000e+00 : f32
      %12 = vector.broadcast %cst_10 : f32 to vector<8x128xf32>
      %c0_11 = arith.constant 0 : index
      %c0_12 = arith.constant 0 : index
      %13 = vector.load %arg10[%c0_11, %c0_12] : memref<8x128xf32, #tpu.memory_space<vmem>>, vector<8x128xf32>
      tpu.vector_store %arg10[%c0_11, %c0_12], %12 {strides = array<i32>} : memref<8x128xf32, #tpu.memory_space<vmem>>, vector<8x128xf32>,
    } else {
    }
    %c0 = arith.constant 0 : index
    %c0_1 = arith.constant 0 : index
    %3 = vector.load %arg10[%c0, %c0_1] : memref<8x128xf32, #tpu.memory_space<vmem>>, vector<8x128xf32>
    %c0_2 = arith.constant 0 : index
    %c0_3 = arith.constant 0 : index
    %4 = vector.load %arg2[%c0_2, %c0_3] : memref<8x256xbf16, #tpu.memory_space<vmem>>, vector<8x256xbf16>
    %c0_4 = arith.constant 0 : index
    %c0_5 = arith.constant 0 : index
    %5 = vector.load %arg3[%c0_4, %c0_5] : memref<256x128xbf16, #tpu.memory_space<vmem>>, vector<256x128xbf16>
    %cst = arith.constant dense<0.000000e+00> : vector<8x128xf32>
    %6 = tpu.matmul %4, %5, %cst {dimension_numbers = #tpu.dot_dimension_numbers<[1], [0], [0], [1], [0, 0, 1, 1], [], []>} : vector<8x256xbf16>, vector<256x128xbf16>, vector<8x128xf32> -> vector<8x128xf32>
    %7 = arith.addf %3, %6 : vector<8x128xf32>
    %c0_6 = arith.constant 0 : index
    %c0_7 = arith.constant 0 : index
    %8 = vector.load %arg10[%c0_6, %c0_7] : memref<8x128xf32, #tpu.memory_space<vmem>>, vector<8x128xf32>
    tpu.vector_store %arg10[%c0_6, %c0_7], %7 {strides = array<i32>} : memref<8x128xf32, #tpu.memory_space<vmem>>, vector<8x128xf32>,
    %c0_i32_8 = arith.constant 0 : i32
    %9 = arith.cmpi eq, %arg1, %c0_i32_8 : i32
    %10 = arith.extui %9 : i1 to i32
    %c0_i32_9 = arith.constant 0 : i32
    %11 = arith.cmpi ne, %10, %c0_i32_9 : i32
    scf.if %11 {
      %c0_10 = arith.constant 0 : index
      %c0_11 = arith.constant 0 : index
      %12 = vector.load %arg10[%c0_10, %c0_11] : memref<8x128xf32, #tpu.memory_space<vmem>>, vector<8x128xf32>
      %c0_12 = arith.constant 0 : index
      %c0_13 = arith.constant 0 : index
      %13 = vector.load %arg4[%c0_12, %c0_13] : memref<1x128xf32, #tpu.memory_space<vmem>>, vector<1x128xf32>
      %14 = vector.broadcast %13 : vector<1x128xf32> to vector<8x128xf32>
      %15 = arith.addf %12, %14 : vector<8x128xf32>
      %cst_14 = arith.constant 0.000000e+00 : f32
      %16 = vector.broadcast %cst_14 : f32 to vector<8x128xf32>
      %17 = arith.maximumf %15, %16 : vector<8x128xf32>
      %c0_15 = arith.constant 0 : index
      %c0_16 = arith.constant 0 : index
      %18 = vector.load %arg5[%c0_15, %c0_16] : memref<128x256xbf16, #tpu.memory_space<vmem>>, vector<128x256xbf16>
      %19 = arith.truncf %17 : vector<8x128xf32> to vector<8x128xbf16>
      %cst_17 = arith.constant dense<0.000000e+00> : vector<8x256xf32>
      %20 = tpu.matmul %19, %18, %cst_17 {dimension_numbers = #tpu.dot_dimension_numbers<[1], [0], [0], [1], [0, 0, 1, 1], [], []>} : vector<8x128xbf16>, vector<128x256xbf16>, vector<8x256xf32> -> vector<8x256xf32>
      %c0_18 = arith.constant 0 : index
      %c0_19 = arith.constant 0 : index
      %21 = vector.load %arg6[%c0_18, %c0_19] : memref<1x256xf32, #tpu.memory_space<vmem>>, vector<1x256xf32>
      %22 = vector.broadcast %21 : vector<1x256xf32> to vector<8x256xf32>
      %23 = arith.addf %20, %22 : vector<8x256xf32>
      %24 = vector.extract_strided_slice %23 {offsets = [0, 0], sizes = [8, 128], strides = [1, 1]} : vector<8x256xf32> to vector<8x128xf32>
      %25 = vector.extract_strided_slice %23 {offsets = [0, 128], sizes = [8, 128], strides = [1, 1]} : vector<8x256xf32> to vector<8x128xf32>
      %26 = math.exp %25 : vector<8x128xf32>
      %c0_20 = arith.constant 0 : index
      %c0_21 = arith.constant 0 : index
      %27 = vector.load %arg7[%c0_20, %c0_21] : memref<8x128xf32, #tpu.memory_space<vmem>>, vector<8x128xf32>
      %28 = arith.mulf %26, %27 : vector<8x128xf32>
      %29 = arith.addf %24, %28 : vector<8x128xf32>
      %c0_22 = arith.constant 0 : index
      %c0_23 = arith.constant 0 : index
      %30 = vector.load %arg8[%c0_22, %c0_23] : memref<8x128xf32, #tpu.memory_space<vmem>>, vector<8x128xf32>
      tpu.vector_store %arg8[%c0_22, %c0_23], %29 {strides = array<i32>} : memref<8x128xf32, #tpu.memory_space<vmem>>, vector<8x128xf32>,
      %cst_24 = arith.constant 1.000000e+00 : f32
      %31 = vector.broadcast %cst_24 : f32 to vector<8x128xf32>
      %32 = arith.addf %31, %25 : vector<8x128xf32>
      %33 = arith.mulf %24, %24 : vector<8x128xf32>
      %34 = arith.subf %32, %33 : vector<8x128xf32>
      %35 = arith.subf %34, %26 : vector<8x128xf32>
      %c8_i32 = arith.constant 8 : i32
      %36 = arith.muli %arg0, %c8_i32 : i32
      %37 = tpu.iota {dimensions = array<i32: 0>} : vector<8x1xi32>
      %38 = vector.broadcast %36 : i32 to vector<8x1xi32>
      %39 = arith.addi %38, %37 : vector<8x1xi32>
      %c2_i32 = arith.constant 2 : i32
      %40 = vector.broadcast %c2_i32 : i32 to vector<8x1xi32>
      %41 = arith.cmpi slt, %39, %40 : vector<8x1xi32>
      %cst_25 = arith.constant 0.000000e+00 : f32
      %42 = vector.shape_cast %41 : vector<8x1xi1> to vector<8x1xi1>
      %43 = vector.broadcast %42 : vector<8x1xi1> to vector<8x128xi1>
      %44 = vector.broadcast %cst_25 : f32 to vector<8x128xf32>
      %45 = arith.select %43, %35, %44 : vector<8x128xi1>, vector<8x128xf32>
      %46 = vector.shape_cast %45 : vector<8x128xf32> to vector<1x8x128xf32>
      %cst_26 = arith.constant dense<0.000000e+00> : vector<8x128xf32>
      %47 = vector.multi_reduction <add>, %46, %cst_26 [0] : vector<1x8x128xf32> to vector<8x128xf32>
      %c0_27 = arith.constant 0 : index
      %c0_28 = arith.constant 0 : index
      %48 = vector.load %arg9[%c0_27, %c0_28] : memref<8x128xf32, #tpu.memory_space<vmem>>, vector<8x128xf32>
      tpu.vector_store %arg9[%c0_27, %c0_28], %47 {strides = array<i32>} : memref<8x128xf32, #tpu.memory_space<vmem>>, vector<8x128xf32>,
    } else {
    }
    return
  }
  func.func @transform_0(%arg0: i32, %arg1: i32) -> (i32, i32) {
    %c0_i32 = arith.constant 0 : i32
    return %arg0, %arg1 : i32, i32
  }
  func.func @transform_1(%arg0: i32, %arg1: i32) -> (i32, i32) {
    %c0_i32 = arith.constant 0 : i32
    %c0_i32_0 = arith.constant 0 : i32
    return %arg1, %c0_i32 : i32, i32
  }
  func.func @transform_2(%arg0: i32, %arg1: i32) -> (i32, i32) {
    %c0_i32 = arith.constant 0 : i32
    %c0_i32_0 = arith.constant 0 : i32
    %c0_i32_1 = arith.constant 0 : i32
    return %c0_i32, %c0_i32_0 : i32, i32
  }
  func.func @transform_3(%arg0: i32, %arg1: i32) -> (i32, i32) {
    %c0_i32 = arith.constant 0 : i32
    %c0_i32_0 = arith.constant 0 : i32
    %c0_i32_1 = arith.constant 0 : i32
    return %c0_i32, %c0_i32_0 : i32, i32
  }
  func.func @transform_4(%arg0: i32, %arg1: i32) -> (i32, i32) {
    %c0_i32 = arith.constant 0 : i32
    %c0_i32_0 = arith.constant 0 : i32
    %c0_i32_1 = arith.constant 0 : i32
    return %c0_i32, %c0_i32_0 : i32, i32
  }
  func.func @transform_5(%arg0: i32, %arg1: i32) -> (i32, i32) {
    %c0_i32 = arith.constant 0 : i32
    %c0_i32_0 = arith.constant 0 : i32
    return %arg0, %c0_i32 : i32, i32
  }
  func.func @transform_6(%arg0: i32, %arg1: i32) -> (i32, i32) {
    %c0_i32 = arith.constant 0 : i32
    %c0_i32_0 = arith.constant 0 : i32
    return %arg0, %c0_i32 : i32, i32
  }
  func.func @transform_7(%arg0: i32, %arg1: i32) -> (i32, i32) {
    %c0_i32 = arith.constant 0 : i32
    %c0_i32_0 = arith.constant 0 : i32
    return %arg0, %c0_i32 : i32, i32
  }
}

</mosaic_0001>

<llo_original>
// kernel: tpu_custom_call.1
$region0: #{tpu_custom_call.1}
  #allocation0 [shape = 'u32[]', space=smem, size = 0x4, offset = 0x4, fixed_abs, tag = 'smem constant byte address 0x4 - core index']
  #allocation1 [shape = 'u32[72,128]{1,0:T(1,128)}', space=vmem, size = 0x9000, scoped, tag = 'internal scratch']
  #allocation2 [shape = 'f32[8,128]{1,0:T(8,128)}', space=vmem, size = 0x1000, scoped, tag = 'scratch operand']
  %s0 = inlined_call_operand.hbm [shape: bf16[8,256], index: 0, kind: input, shape index: {}]
  %s1 = inlined_call_operand.hbm [shape: bf16[256,128], index: 1, kind: input, shape index: {}]
  %s2 = inlined_call_operand.vmem [shape: f32[1,128], index: 2, kind: input, shape index: {}]
  %s3 = inlined_call_operand.hbm [shape: bf16[128,256], index: 3, kind: input, shape index: {}]
  %s4 = inlined_call_operand.vmem [shape: f32[1,256], index: 4, kind: input, shape index: {}]
  %s5 = inlined_call_operand.hbm [shape: f32[8,128], index: 5, kind: input, shape index: {}]
  %s6 = inlined_call_operand.hbm [shape: f32[8,128], index: 6, kind: output, shape index: {0}]
  %s7 = inlined_call_operand.hbm [shape: f32[8,128], index: 7, kind: output, shape index: {1}]
  %8 = xla_tuple %s6, %s7
  %s9 = sld [smem:[#allocation0]]
  $region66: #{tpu_custom_call.1} parent=0
    _
  %s11 = ssub.s32 1, %s9
  %s12 = scalar_select 0, %s11, %s9
  $region1: #{tpu_custom_call.1} parent=0
    #allocation3 [shape = 'u8[4096]{0}', space=vmem, size = 0x1000, scoped, tag = 'input window, operand 0, single buffered']
    #allocation4 [shape = 's32[1]{0}', space=sflag, size = 0x4, scoped, tag = 'scoped memory for tpu_custom_call.1']
    #allocation5 [shape = 's32[1]{0}', space=sflag, size = 0x4, scoped, tag = 'scoped memory for tpu_custom_call.1']
    #allocation6 [shape = 'u8[65536]{0}', space=vmem, size = 0x10000, scoped, tag = 'input window, operand 1, single buffered']
    #allocation7 [shape = 's32[1]{0}', space=sflag, size = 0x4, scoped, tag = 'scoped memory for tpu_custom_call.1']
    #allocation8 [shape = 'u8[65536]{0}', space=vmem, size = 0x10000, scoped, tag = 'input window, operand 3, single buffered']
    #allocation9 [shape = 'u8[4096]{0}', space=vmem, size = 0x1000, scoped, tag = 'input window, operand 5, single buffered']
    #allocation10 [shape = 's32[1]{0}', space=sflag, size = 0x4, scoped, tag = 'scoped memory for tpu_custom_call.1']
    #allocation11 [shape = 'u8[4096]{0}', space=vmem, size = 0x1000, scoped, tag = 'output window, operand 0, single buffered']
    #allocation12 [shape = 'u8[4096]{0}', space=vmem, size = 0x1000, scoped, tag = 'output window, operand 1, single buffered']
    #allocation13 [shape = 's32[1]{0}', space=sflag, size = 0x4, scoped, tag = 'scoped memory for tpu_custom_call.1']
    %13 = vsyncpa [#allocation4], 0
    %14 = vsyncpa [#allocation7], 0
    %15 = vsyncpa [#allocation10], 0
    %16 = vsyncpa [#allocation5], 0
    %17 = vsyncpa [#allocation13], 0
    // Predicated region
    $region2: #{tpu_custom_call.1} parent=1 // pred_check
      _
    $region3: #{tpu_custom_call.1} parent=1 // pred_check_branch
      %19 = sbr.rel (0) target = $region5
    $region4: #{tpu_custom_call.1} parent=1 // pred_region
      %21 = vsyncadd [#allocation4], 0
      %s23 = sshll.u32 %s0, 4
      %s24 = int_to_ptr.hbm [resolvable:$true] %s23
      %s25 = sshll.u32 [#allocation3], 4
      %s26 = int_to_ptr.vmem [resolvable:$true] %s25
      %28 = dma.hbm_to_vmem [thread:$0]  %s24, 128, %s26, [#allocation4]
    $region5: #{tpu_custom_call.1} parent=1 // pred_fallthru
      _
    // Predicated region
    $region6: #{tpu_custom_call.1} parent=1 // pred_check
      _
    $region7: #{tpu_custom_call.1} parent=1 // pred_check_branch
      %30 = sbr.rel (0) target = $region9
    $region8: #{tpu_custom_call.1} parent=1 // pred_region
      %32 = vsyncadd [#allocation7], 0
      %s33 = sshll.u32 %s1, 4
      %s34 = int_to_ptr.hbm [resolvable:$true] %s33
      %s35 = sshll.u32 [#allocation6], 4
      %s36 = int_to_ptr.vmem [resolvable:$true] %s35
      %41 = dma.hbm_to_vmem [thread:$0]  %s34, 2048, %s36, [#allocation7], 64, 64, 4
    $region9: #{tpu_custom_call.1} parent=1 // pred_fallthru
      _
    // Predicated region
    $region10: #{tpu_custom_call.1} parent=1 // pred_check
      _
    $region11: #{tpu_custom_call.1} parent=1 // pred_check_branch
      %43 = sbr.rel (0) target = $region13
    $region12: #{tpu_custom_call.1} parent=1 // pred_region
      _
    $region13: #{tpu_custom_call.1} parent=1 // pred_fallthru
      _
    // Predicated region
    $region14: #{tpu_custom_call.1} parent=1 // pred_check
      _
    $region15: #{tpu_custom_call.1} parent=1 // pred_check_branch
      %45 = sbr.rel (0) target = $region17
    $region16: #{tpu_custom_call.1} parent=1 // pred_region
      %47 = vsyncadd [#allocation7], 0
      %s48 = sshll.u32 %s3, 4
      %s49 = int_to_ptr.hbm [resolvable:$true] %s48
      %s50 = sshll.u32 [#allocation8], 4
      %s51 = int_to_ptr.vmem [resolvable:$true] %s50
      %56 = dma.hbm_to_vmem [thread:$0]  %s49, 2048, %s51, [#allocation7], 128, 128, 8
    $region17: #{tpu_custom_call.1} parent=1 // pred_fallthru
      _
    // Predicated region
    $region18: #{tpu_custom_call.1} parent=1 // pred_check
      _
    $region19: #{tpu_custom_call.1} parent=1 // pred_check_branch
      %58 = sbr.rel (0) target = $region21
    $region20: #{tpu_custom_call.1} parent=1 // pred_region
      _
    $region21: #{tpu_custom_call.1} parent=1 // pred_fallthru
      _
    // Predicated region
    $region22: #{tpu_custom_call.1} parent=1 // pred_check
      _
    $region23: #{tpu_custom_call.1} parent=1 // pred_check_branch
      %60 = sbr.rel (0) target = $region25
    $region24: #{tpu_custom_call.1} parent=1 // pred_region
      %62 = vsyncadd [#allocation10], 0
      %s64 = sshll.u32 %s5, 4
      %s65 = int_to_ptr.hbm [resolvable:$true] %s64
      %s66 = sshll.u32 [#allocation9], 4
      %s67 = int_to_ptr.vmem [resolvable:$true] %s66
      %69 = dma.hbm_to_vmem [thread:$0]  %s65, 128, %s67, [#allocation10]
    $region25: #{tpu_custom_call.1} parent=1 // pred_fallthru
      _
    // Predicated region
    $region26: #{tpu_custom_call.1} parent=1 // pred_check
      _
    $region27: #{tpu_custom_call.1} parent=1 // pred_check_branch
      %71 = sbr.rel (0) target = $region29
    $region28: #{tpu_custom_call.1} parent=1 // pred_region
      %73 = dma.done [#allocation4], 128
    $region29: #{tpu_custom_call.1} parent=1 // pred_fallthru
      _
    // Predicated region
    $region30: #{tpu_custom_call.1} parent=1 // pred_check
      _
    $region31: #{tpu_custom_call.1} parent=1 // pred_check_branch
      %75 = sbr.rel (0) target = $region33
    $region32: #{tpu_custom_call.1} parent=1 // pred_region
      %77 = dma.done [#allocation7], 2048
    $region33: #{tpu_custom_call.1} parent=1 // pred_fallthru
      _
    // Predicated region
    $region34: #{tpu_custom_call.1} parent=1 // pred_check
      _
    $region35: #{tpu_custom_call.1} parent=1 // pred_check_branch
      %79 = sbr.rel (0) target = $region37
    $region36: #{tpu_custom_call.1} parent=1 // pred_region
      %81 = dma.done [#allocation7], 2048
    $region37: #{tpu_custom_call.1} parent=1 // pred_fallthru
      _
    // Predicated region
    $region38: #{tpu_custom_call.1} parent=1 // pred_check
      _
    $region39: #{tpu_custom_call.1} parent=1 // pred_check_branch
      %83 = sbr.rel (0) target = $region41
    $region40: #{tpu_custom_call.1} parent=1 // pred_region
      %85 = dma.done [#allocation10], 128
    $region41: #{tpu_custom_call.1} parent=1 // pred_fallthru
      _
    %p86 = scmp.eq.s32.totalorder 0, 0
    // Predicated region
    $region42: #{tpu_custom_call.1} parent=1 // pred_check
      %p87 = pneg %p86
    $region43: #{tpu_custom_call.1} parent=1 // pred_check_branch
      %89 = sbr.rel (%p87) target = $region45
    $region44: #{tpu_custom_call.1} parent=1 // pred_region
      %90 = vst [vmem:[#allocation2] sm:$0xff] 0.0
    $region45: #{tpu_custom_call.1} parent=1 // pred_fallthru
      _
    %v91 = vld [vmem:[#allocation2] sm:$0xff]
    %v92 = vld [vmem:[#allocation3] sm:$0xff]
    %v93 = vld [vmem:[#allocation6] sm:$0xf]
    %v94 = vld [vmem:[#allocation6 + $0x4] sm:$0xf]
    %v95 = vld [vmem:[#allocation6 + $0x8] sm:$0xf]
    %v96 = vld [vmem:[#allocation6 + $0xc] sm:$0xf]
    %v97 = vld [vmem:[#allocation6 + $0x10] sm:$0xf]
    %v98 = vld [vmem:[#allocation6 + $0x14] sm:$0xf]
    %v99 = vld [vmem:[#allocation6 + $0x18] sm:$0xf]
    %v100 = vld [vmem:[#allocation6 + $0x1c] sm:$0xf]
    %v101 = vld [vmem:[#allocation6 + $0x20] sm:$0xf]
    %v102 = vld [vmem:[#allocation6 + $0x24] sm:$0xf]
    %v103 = vld [vmem:[#allocation6 + $0x28] sm:$0xf]
    %v104 = vld [vmem:[#allocation6 + $0x2c] sm:$0xf]
    %v105 = vld [vmem:[#allocation6 + $0x30] sm:$0xf]
    %v106 = vld [vmem:[#allocation6 + $0x34] sm:$0xf]
    %v107 = vld [vmem:[#allocation6 + $0x38] sm:$0xf]
    %v108 = vld [vmem:[#allocation6 + $0x3c] sm:$0xf]
    %v109 = vld [vmem:[#allocation6 + $0x40] sm:$0xf]
    %v110 = vld [vmem:[#allocation6 + $0x44] sm:$0xf]
    %v111 = vld [vmem:[#allocation6 + $0x48] sm:$0xf]
    %v112 = vld [vmem:[#allocation6 + $0x4c] sm:$0xf]
    %v113 = vld [vmem:[#allocation6 + $0x50] sm:$0xf]
    %v114 = vld [vmem:[#allocation6 + $0x54] sm:$0xf]
    %v115 = vld [vmem:[#allocation6 + $0x58] sm:$0xf]
    %v116 = vld [vmem:[#allocation6 + $0x5c] sm:$0xf]
    %v117 = vld [vmem:[#allocation6 + $0x60] sm:$0xf]
    %v118 = vld [vmem:[#allocation6 + $0x64] sm:$0xf]
    %v119 = vld [vmem:[#allocation6 + $0x68] sm:$0xf]
    %v120 = vld [vmem:[#allocation6 + $0x6c] sm:$0xf]
    %v121 = vld [vmem:[#allocation6 + $0x70] sm:$0xf]
    %v122 = vld [vmem:[#allocation6 + $0x74] sm:$0xf]
    %v123 = vld [vmem:[#allocation6 + $0x78] sm:$0xf]
    %v124 = vld [vmem:[#allocation6 + $0x7c] sm:$0xf]
    %v126 = vunpack.c.l.b16 %v92
    %v127 = vunpack.c.h.b16 %v92
    %v128 = vpack.c.b16 %v126, %v126
    %v129 = vpack.c.b16 %v127, %v127
    %v164 = vunpack.c.l.b16 %v93
    %v165 = vunpack.c.l.b16 %v94
    %v166 = vunpack.c.l.b16 %v95
    %v167 = vunpack.c.l.b16 %v96
    %v168 = vunpack.c.l.b16 %v97
    %v169 = vunpack.c.l.b16 %v98
    %v170 = vunpack.c.l.b16 %v99
    %v171 = vunpack.c.l.b16 %v100
    %v172 = vunpack.c.l.b16 %v101
    %v173 = vunpack.c.l.b16 %v102
    %v174 = vunpack.c.l.b16 %v103
    %v175 = vunpack.c.l.b16 %v104
    %v176 = vunpack.c.l.b16 %v105
    %v177 = vunpack.c.l.b16 %v106
    %v178 = vunpack.c.l.b16 %v107
    %v179 = vunpack.c.l.b16 %v108
    %v180 = vunpack.c.l.b16 %v109
    %v181 = vunpack.c.l.b16 %v110
    %v182 = vunpack.c.l.b16 %v111
    %v183 = vunpack.c.l.b16 %v112
    %v184 = vunpack.c.l.b16 %v113
    %v185 = vunpack.c.l.b16 %v114
    %v186 = vunpack.c.l.b16 %v115
    %v187 = vunpack.c.l.b16 %v116
    %v188 = vunpack.c.l.b16 %v117
    %v189 = vunpack.c.l.b16 %v118
    %v190 = vunpack.c.l.b16 %v119
    %v191 = vunpack.c.l.b16 %v120
    %v192 = vunpack.c.l.b16 %v121
    %v193 = vunpack.c.l.b16 %v122
    %v194 = vunpack.c.l.b16 %v123
    %v195 = vunpack.c.l.b16 %v124
    %v196 = vpack.c.b16 %v165, %v164
    %v197 = vpack.c.b16 %v167, %v166
    %v198 = vpack.c.b16 %v169, %v168
    %v199 = vpack.c.b16 %v171, %v170
    %v200 = vpack.c.b16 %v173, %v172
    %v201 = vpack.c.b16 %v175, %v174
    %v202 = vpack.c.b16 %v177, %v176
    %v203 = vpack.c.b16 %v179, %v178
    %v204 = vpack.c.b16 %v181, %v180
    %v205 = vpack.c.b16 %v183, %v182
    %v206 = vpack.c.b16 %v185, %v184
    %v207 = vpack.c.b16 %v187, %v186
    %v208 = vpack.c.b16 %v189, %v188
    %v209 = vpack.c.b16 %v191, %v190
    %v210 = vpack.c.b16 %v193, %v192
    %v211 = vpack.c.b16 %v195, %v194
    %228 = vmatpush.bf16.msra.mxu0 %v203
    %229 = vmatpush.bf16.msra.mxu0 %v202
    %230 = vmatpush.bf16.msra.mxu0 %v201
    %231 = vmatpush.bf16.msra.mxu0 %v200
    %232 = vmatpush.bf16.msra.mxu0 %v199
    %233 = vmatpush.bf16.msra.mxu0 %v198
    %234 = vmatpush.bf16.msra.mxu0 %v197
    %235 = vmatpush.bf16.msra.mxu0 %v196
    %236 = vmatmul.bf16.gmra.mxu0 %v128
    %v237 = vpop.f32.mrf.mxu0
    %v238 = vadd.f32 0.0, %v237
    %v239 = vpop.f32.mrf.mxu0
    %240 = vdwg.mxu0
    %241 = vmatpush.bf16.msra.mxu0 %v211
    %242 = vmatpush.bf16.msra.mxu0 %v210
    %243 = vmatpush.bf16.msra.mxu0 %v209
    %244 = vmatpush.bf16.msra.mxu0 %v208
    %245 = vmatpush.bf16.msra.mxu0 %v207
    %246 = vmatpush.bf16.msra.mxu0 %v206
    %247 = vmatpush.bf16.msra.mxu0 %v205
    %248 = vmatpush.bf16.msra.mxu0 %v204
    %249 = vmatmul.bf16.gmra.mxu0 %v129
    %v250 = vpop.f32.mrf.mxu0
    %v251 = vadd.f32 %v238, %v250
    %v252 = vpop.f32.mrf.mxu0
    %253 = vdwg.mxu0
    %v254 = vadd.f32 %v91, %v251
    %255 = vst [vmem:[#allocation2] sm:$0xff] %v254
    // Predicated region
    $region46: #{tpu_custom_call.1} parent=1 // pred_check
      %p256 = pneg %p86
    $region47: #{tpu_custom_call.1} parent=1 // pred_check_branch
      %258 = sbr.rel (%p256) target = $region49
    $region48: #{tpu_custom_call.1} parent=1 // pred_region
      %v259 = vld [vmem:[#allocation2] sm:$0xff]
      %v260 = vld [vmem:[%s2] sm:$0x1]
      %v262 = vperm.slane %v260, 0
      %v264 = vadd.f32 %v259, %v262
      %v265 = vmax.f32 %v264, 0.0
      %v266 = vld [vmem:[#allocation8] sm:$0xff]
      %v267 = vld [vmem:[#allocation8 + $0x8] sm:$0xff]
      %v268 = vld [vmem:[#allocation8 + $0x10] sm:$0xff]
      %v269 = vld [vmem:[#allocation8 + $0x18] sm:$0xff]
      %v270 = vld [vmem:[#allocation8 + $0x20] sm:$0xff]
      %v271 = vld [vmem:[#allocation8 + $0x28] sm:$0xff]
      %v272 = vld [vmem:[#allocation8 + $0x30] sm:$0xff]
      %v273 = vld [vmem:[#allocation8 + $0x38] sm:$0xff]
      %v274 = vld [vmem:[#allocation8 + $0x40] sm:$0xff]
      %v275 = vld [vmem:[#allocation8 + $0x48] sm:$0xff]
      %v276 = vld [vmem:[#allocation8 + $0x50] sm:$0xff]
      %v277 = vld [vmem:[#allocation8 + $0x58] sm:$0xff]
      %v278 = vld [vmem:[#allocation8 + $0x60] sm:$0xff]
      %v279 = vld [vmem:[#allocation8 + $0x68] sm:$0xff]
      %v280 = vld [vmem:[#allocation8 + $0x70] sm:$0xff]
      %v281 = vld [vmem:[#allocation8 + $0x78] sm:$0xff]
      %v282 = vpack.c.bf16 %v265, %v265
      %v283 = vld [vmem:[%s4] sm:$0x3]
      %v285 = vperm.slane %v283, 0
      %v286 = vperm.slane %v283, 1
      %v305 = vunpack.c.l.b16 %v266
      %v306 = vunpack.c.h.b16 %v266
      %v307 = vunpack.c.l.b16 %v267
      %v308 = vunpack.c.h.b16 %v267
      %v309 = vunpack.c.l.b16 %v268
      %v310 = vunpack.c.h.b16 %v268
      %v311 = vunpack.c.l.b16 %v269
      %v312 = vunpack.c.h.b16 %v269
      %v313 = vunpack.c.l.b16 %v270
      %v314 = vunpack.c.h.b16 %v270
      %v315 = vunpack.c.l.b16 %v271
      %v316 = vunpack.c.h.b16 %v271
      %v317 = vunpack.c.l.b16 %v272
      %v318 = vunpack.c.h.b16 %v272
      %v319 = vunpack.c.l.b16 %v273
      %v320 = vunpack.c.h.b16 %v273
      %v321 = vunpack.c.l.b16 %v274
      %v322 = vunpack.c.h.b16 %v274
      %v323 = vunpack.c.l.b16 %v275
      %v324 = vunpack.c.h.b16 %v275
      %v325 = vunpack.c.l.b16 %v276
      %v326 = vunpack.c.h.b16 %v276
      %v327 = vunpack.c.l.b16 %v277
      %v328 = vunpack.c.h.b16 %v277
      %v329 = vunpack.c.l.b16 %v278
      %v330 = vunpack.c.h.b16 %v278
      %v331 = vunpack.c.l.b16 %v279
      %v332 = vunpack.c.h.b16 %v279
      %v333 = vunpack.c.l.b16 %v280
      %v334 = vunpack.c.h.b16 %v280
      %v335 = vunpack.c.l.b16 %v281
      %v336 = vunpack.c.h.b16 %v281
      %v337 = vpack.c.b16 %v307, %v305
      %v338 = vpack.c.b16 %v308, %v306
      %v339 = vpack.c.b16 %v311, %v309
      %v340 = vpack.c.b16 %v312, %v310
      %v341 = vpack.c.b16 %v315, %v313
      %v342 = vpack.c.b16 %v316, %v314
      %v343 = vpack.c.b16 %v319, %v317
      %v344 = vpack.c.b16 %v320, %v318
      %v345 = vpack.c.b16 %v323, %v321
      %v346 = vpack.c.b16 %v324, %v322
      %v347 = vpack.c.b16 %v327, %v325
      %v348 = vpack.c.b16 %v328, %v326
      %v349 = vpack.c.b16 %v331, %v329
      %v350 = vpack.c.b16 %v332, %v330
      %v351 = vpack.c.b16 %v335, %v333
      %v352 = vpack.c.b16 %v336, %v334
      %369 = vmatpush.bf16.msra.mxu0 %v351
      %370 = vmatpush.bf16.msra.mxu0 %v349
      %371 = vmatpush.bf16.msra.mxu0 %v347
      %372 = vmatpush.bf16.msra.mxu0 %v345
      %373 = vmatpush.bf16.msra.mxu0 %v343
      %374 = vmatpush.bf16.msra.mxu0 %v341
      %375 = vmatpush.bf16.msra.mxu0 %v339
      %376 = vmatpush.bf16.msra.mxu0 %v337
      %377 = vmatmul.bf16.gmra.mxu0 %v282
      %v378 = vpop.f32.mrf.mxu0
      %v379 = vadd.f32 %v285, %v378
      %v380 = vpop.f32.mrf.mxu0
      %381 = vdwg.mxu0
      %382 = vmatpush.bf16.msra.mxu0 %v352
      %383 = vmatpush.bf16.msra.mxu0 %v350
      %384 = vmatpush.bf16.msra.mxu0 %v348
      %385 = vmatpush.bf16.msra.mxu0 %v346
      %386 = vmatpush.bf16.msra.mxu0 %v344
      %387 = vmatpush.bf16.msra.mxu0 %v342
      %388 = vmatpush.bf16.msra.mxu0 %v340
      %389 = vmatpush.bf16.msra.mxu0 %v338
      %390 = vmatmul.bf16.gmra.mxu0 %v282
      %v391 = vpop.f32.mrf.mxu0
      %v392 = vadd.f32 %v286, %v391
      %v393 = vpop.f32.mrf.mxu0
      %394 = vdwg.mxu0
      %v395 = vmul.f32 %v392, 1.442695
      %v396 = vpow.pop %v395
      %v397 = vld [vmem:[#allocation9] sm:$0xff]
      %v398 = vmul.f32 %v396, %v397
      %v399 = vadd.f32 %v379, %v398
      %400 = vst [vmem:[#allocation11] sm:$0xff] %v399
      %v401 = vadd.f32 %v392, 1.0
      %v402 = vmul.f32 %v379, %v379
      %v403 = vsub.f32 %v401, %v402
      %v404 = vsub.f32 %v403, %v396
      %s405 = smul.u32 0, 8
      %v406 = vlaneseq
      %v407 = vshrl.u32 %v406, 7
      %v408 = vstv %s405
      %v409 = vadd.s32 %v408, %v407
      %vm410 = vcmp.lt.s32.totalorder %v409, 2
      %v411 = vsel %vm410, 1, 0
      %vm412 = vcmp.eq.s32.totalorder %v411, 1
      %v413 = vsel %vm412, %v404, 0.0
      %v414 = vadd.f32 %v413, 0.0
      %415 = vst [vmem:[#allocation12] sm:$0xff] %v414
    $region49: #{tpu_custom_call.1} parent=1 // pred_fallthru
      _
    // Predicated region
    $region50: #{tpu_custom_call.1} parent=1 // pred_check
      _
    $region51: #{tpu_custom_call.1} parent=1 // pred_check_branch
      %417 = sbr.rel (0) target = $region53
    $region52: #{tpu_custom_call.1} parent=1 // pred_region
      %419 = vsyncadd [#allocation5], 0
      %s421 = sshll.u32 [#allocation11], 4
      %s422 = int_to_ptr.vmem [resolvable:$true] %s421
      %s423 = sshll.u32 %s6, 4
      %s424 = int_to_ptr.hbm [resolvable:$true] %s423
      %426 = dma.vmem_to_hbm [thread:$0]  %s422, 128, %s424, [#allocation5]
    $region53: #{tpu_custom_call.1} parent=1 // pred_fallthru
      _
    // Predicated region
    $region54: #{tpu_custom_call.1} parent=1 // pred_check
      _
    $region55: #{tpu_custom_call.1} parent=1 // pred_check_branch
      %428 = sbr.rel (0) target = $region57
    $region56: #{tpu_custom_call.1} parent=1 // pred_region
      %430 = vsyncadd [#allocation13], 0
      %s432 = sshll.u32 [#allocation12], 4
      %s433 = int_to_ptr.vmem [resolvable:$true] %s432
      %s434 = sshll.u32 %s7, 4
      %s435 = int_to_ptr.hbm [resolvable:$true] %s434
      %437 = dma.vmem_to_hbm [thread:$0]  %s433, 128, %s435, [#allocation13]
    $region57: #{tpu_custom_call.1} parent=1 // pred_fallthru
      _
    // Predicated region
    $region58: #{tpu_custom_call.1} parent=1 // pred_check
      _
    $region59: #{tpu_custom_call.1} parent=1 // pred_check_branch
      %439 = sbr.rel (0) target = $region61
    $region60: #{tpu_custom_call.1} parent=1 // pred_region
      %441 = dma.done [#allocation5], 128
    $region61: #{tpu_custom_call.1} parent=1 // pred_fallthru
      _
    // Predicated region
    $region62: #{tpu_custom_call.1} parent=1 // pred_check
      _
    $region63: #{tpu_custom_call.1} parent=1 // pred_check_branch
      %443 = sbr.rel (0) target = $region65
    $region64: #{tpu_custom_call.1} parent=1 // pred_region
      %445 = dma.done [#allocation13], 128
    $region65: #{tpu_custom_call.1} parent=1 // pred_fallthru
      _
    %446 = vsyncpa [#allocation4], 1
    %447 = vsyncpa [#allocation7], 1
    %448 = vsyncpa [#allocation10], 1
    %449 = vsyncpa [#allocation5], 1
    %450 = vsyncpa [#allocation13], 1

</llo_original>
